<compile_context>
chip_gen: v6e
topology: v6e:2x2x1
jax: 0.10.0
libtpu: 0.0.40
codegen_flags: <defaults>
</compile_context>

<pallas_src>
import jax
import jax.numpy as jnp
from jax.experimental import pallas as pl
from jax.experimental.pallas import tpu as pltpu

# ----------------------------- configuration -------------------------------
B, C, H, W = 2, 3, 16, 16          # images B x C x H x W
P_SZ = 4                           # patch size
NP = (H // P_SZ) * (W // P_SZ)     # patch tokens per image = 16
PD = C * P_SZ * P_SZ               # patch dim = 48
D = 32                             # hidden dim
DH = 64                            # channel-mixing hidden dim
L = 8                              # message length (bits)
LANES = 128                        # lane-dense width for activations/weights
M_TOK = B * NP                     # batch merged into M axis = 32
FEAT_ONE = PD + L                  # input feature index carrying constant 1.0

# ------------- packed parameter slab layout (rows, all 128 lanes) -----------
ROW_W0 = 0       # 128 rows: rows 0:48=2*w_emb, 48:56=2*w_msg, 56=combined bias
ROW_T1 = 128     # 32 rows:  block_diag(w_t1) over batch, lanes 0:M_TOK
ROW_T2 = 160     # 32 rows:  block_diag(w_t2) over batch, lanes 0:M_TOK
ROW_C1 = 192     # 128 rows: w_c1 zero-padded to [128,128]
ROW_C2 = 320     # 128 rows: w_c2 zero-padded to [128,128]
ROW_LAST = 448   # 128 rows: w_last zero-padded to [128,128]
ROW_BLAST = 576  # 1 row:    b_last padded to 128 lanes
R_TOTAL = 584    # total rows (multiple of 8)


# ------------------------------ glue (JAX) ---------------------------------
def patchify(x):
    # [B, C, H, W] -> [B, NP, C*p*p]
    b, c, h, w = x.shape
    x = x.reshape(b, c, h // P_SZ, P_SZ, w // P_SZ, P_SZ)
    x = x.transpose(0, 2, 4, 1, 3, 5)            # [B, H/p, W/p, C, p, p]
    return x.reshape(b, NP, PD)


def unpatchify(x):
    # [B, NP, C*p*p] -> [B, C, H, W]
    b = x.shape[0]
    x = x.reshape(b, H // P_SZ, W // P_SZ, C, P_SZ, P_SZ)
    x = x.transpose(0, 3, 1, 4, 2, 5)            # [B, C, H/p, p, W/p, p]
    return x.reshape(b, C, H, W)


# ------------------------------ Pallas kernel -------------------------------
def patchmixer_kernel(x_ref, params_ref, out_ref):
    # x_ref: [M_TOK, 128] = [patch(48) | msg(8) | 1.0 | zeros] per token row.
    x = x_ref[...]                                           # [32, 128]

    # Fused patch+msg embedding; preprocess (*2-1) and both biases are folded
    # into W0 (bias rides on the constant-1 input feature).  Full-lane load.
    w0 = params_ref[ROW_W0:ROW_W0 + LANES, :]                # [128, 128]
    tok = jnp.dot(x, w0, preferred_element_type=jnp.float32)  # [32, 128]

    # Token-mixing MLP: block-diagonal over the batch, one dot for all images.
    # (only place with a lane sub-slice: the weight is inherently 32x32.)
    wt1 = params_ref[ROW_T1:ROW_T1 + M_TOK, 0:M_TOK]         # [32, 32]
    wt2 = params_ref[ROW_T2:ROW_T2 + M_TOK, 0:M_TOK]         # [32, 32]
    h = jax.nn.gelu(jnp.dot(wt1, tok, preferred_element_type=jnp.float32))
    tok = tok + jnp.dot(wt2, h, preferred_element_type=jnp.float32)

    # Channel-mixing MLP; weights zero-padded to full [128,128] tiles, so the
    # padded activation lanes stay exactly zero (gelu(0)=0).
    wc1 = params_ref[ROW_C1:ROW_C1 + LANES, :]               # [128, 128]
    wc2 = params_ref[ROW_C2:ROW_C2 + LANES, :]               # [128, 128]
    h2 = jax.nn.gelu(jnp.dot(tok, wc1, preferred_element_type=jnp.float32))
    tok = tok + jnp.dot(h2, wc2, preferred_element_type=jnp.float32)

    # Last layer: lane-dense projection (cols >= PD are zero by construction).
    wl = params_ref[ROW_LAST:ROW_LAST + LANES, :]            # [128, 128]
    bl = params_ref[ROW_BLAST:ROW_BLAST + 1, :]              # [1, 128]
    out_ref[...] = jnp.dot(tok, wl, preferred_element_type=jnp.float32) + bl


# --------------------------- parameter packing ------------------------------
def pack_params(params):
    """Fold the *2-1 preprocess + biases into the embed weight, block-diagonal
    the token-mix weights over the batch, zero-pad every weight to 128 lanes
    (and K to 128 where applicable), and pack into one [R_TOTAL,128] slab."""
    slab = jnp.zeros((R_TOTAL, LANES), jnp.float32)

    # (2x-1)@W + b == 2x@W + (b - sum_rows(W)); both biases combined, carried
    # by the constant-1 input feature at index FEAT_ONE.
    b_comb = (params["b_emb"] + params["b_msg"]
              - jnp.sum(params["w_emb"], axis=0, keepdims=True)
              - jnp.sum(params["w_msg"], axis=0, keepdims=True))    # [1, D]

    slab = slab.at[ROW_W0 + 0:ROW_W0 + PD, :D].set(2.0 * params["w_emb"])
    slab = slab.at[ROW_W0 + PD:ROW_W0 + PD + L, :D].set(2.0 * params["w_msg"])
    slab = slab.at[ROW_W0 + FEAT_ONE:ROW_W0 + FEAT_ONE + 1, :D].set(b_comb)

    eye_b = jnp.eye(B, dtype=jnp.float32)
    wt1_bd = jnp.kron(eye_b, params["w_t1"])                        # [32, 32]
    wt2_bd = jnp.kron(eye_b, params["w_t2"])                        # [32, 32]
    slab = slab.at[ROW_T1:ROW_T1 + M_TOK, :M_TOK].set(wt1_bd)
    slab = slab.at[ROW_T2:ROW_T2 + M_TOK, :M_TOK].set(wt2_bd)

    slab = slab.at[ROW_C1:ROW_C1 + D, :DH].set(params["w_c1"])
    slab = slab.at[ROW_C2:ROW_C2 + DH, :D].set(params["w_c2"])
    slab = slab.at[ROW_LAST:ROW_LAST + D, :PD].set(params["w_last"])
    slab = slab.at[ROW_BLAST:ROW_BLAST + 1, :PD].set(params["b_last"])
    return slab


# ------------------------------- wrapper ------------------------------------
@jax.jit
def patchmixer_embedder_forward(imgs, msgs, param_slab):
    """imgs: [B, C, H, W] float32 in [0,1]; msgs: [B, L] float32 {0,1};
    param_slab: [R_TOTAL, 128] packed parameters (see pack_params)."""
    patches = patchify(imgs).reshape(M_TOK, PD)                      # [32, 48]
    msg_tok = jnp.broadcast_to(msgs[:, None, :], (B, NP, L)).reshape(M_TOK, L)
    ones = jnp.ones((M_TOK, 1), jnp.float32)                         # bias carrier
    pad = jnp.zeros((M_TOK, LANES - FEAT_ONE - 1), jnp.float32)
    x_aug = jnp.concatenate([patches, msg_tok, ones, pad], axis=-1)  # [32, 128]

    out = pl.pallas_call(
        patchmixer_kernel,
        out_shape=jax.ShapeDtypeStruct((M_TOK, LANES), jnp.float32),
        grid=(1,),
        in_specs=[
            pl.BlockSpec((M_TOK, LANES), lambda i: (0, 0)),     # fused input
            pl.BlockSpec((R_TOTAL, LANES), lambda i: (0, 0)),   # packed params
        ],
        out_specs=pl.BlockSpec((M_TOK, LANES), lambda i: (0, 0)),
        compiler_params=pltpu.CompilerParams(
            dimension_semantics=("arbitrary",)),
        cost_estimate=pl.CostEstimate(
            flops=4_718_592, transcendentals=8_192, bytes_accessed=331_776),
    )(x_aug, param_slab)

    out_patches = out[:, :PD].reshape(B, NP, PD)   # drop zero lane padding
    return unpatchify(out_patches)                 # [B, C, H, W]


# ----------------------- pure-JAX reference (check) -------------------------
def reference_forward(imgs, msgs, params):
    x = imgs * 2.0 - 1.0
    patches = patchify(x)                                           # [B,NP,PD]
    tok = patches @ params["w_emb"] + params["b_emb"]               # [B,NP,D]
    m = msgs * 2.0 - 1.0
    msg_emb = m @ params["w_msg"] + params["b_msg"]                 # [B,D]
    tok = tok + msg_emb[:, None, :]
    h = jax.nn.gelu(jnp.einsum("tn,bnd->btd", params["w_t1"], tok))
    tok = tok + jnp.einsum("nt,btd->bnd", params["w_t2"], h)
    h2 = jax.nn.gelu(tok @ params["w_c1"])
    tok = tok + h2 @ params["w_c2"]
    out = tok @ params["w_last"] + params["b_last"]
    return unpatchify(out)


# --------------------------------- main -------------------------------------
def init_params(key):
    ks = jax.random.split(key, 8)
    scale = 0.1
    return {
        "w_emb":  scale * jax.random.normal(ks[0], (PD, D), jnp.float32),
        "b_emb":  jnp.zeros((1, D), jnp.float32),
        "w_msg":  scale * jax.random.normal(ks[1], (L, D), jnp.float32),
        "b_msg":  jnp.zeros((1, D), jnp.float32),
        "w_t1":   scale * jax.random.normal(ks[2], (NP, NP), jnp.float32),
        "w_t2":   scale * jax.random.normal(ks[3], (NP, NP), jnp.float32),
        "w_c1":   scale * jax.random.normal(ks[4], (D, DH), jnp.float32),
        "w_c2":   scale * jax.random.normal(ks[5], (DH, D), jnp.float32),
        "w_last": scale * jax.random.normal(ks[6], (D, PD), jnp.float32),
        "b_last": jnp.zeros((1, PD), jnp.float32),
    }


if __name__ == "__main__":
    key = jax.random.PRNGKey(0)
    k_img, k_msg, k_par = jax.random.split(key, 3)

    imgs = jax.random.uniform(k_img, (B, C, H, W), jnp.float32)          # in [0,1]
    msgs = jax.random.bernoulli(k_msg, 0.5, (B, L)).astype(jnp.float32)  # {0,1} bits
    params = init_params(k_par)

    param_slab = jax.block_until_ready(pack_params(params))  # one-time fold/pack

    out = patchmixer_embedder_forward(imgs, msgs, param_slab)
    out = jax.block_until_ready(out)

    ref = reference_forward(imgs, msgs, params)
    assert out.shape == (B, C, H, W)
    assert jnp.allclose(out, ref, atol=1e-4, rtol=1e-3), \
        f"max err {jnp.max(jnp.abs(out - ref))}"

    # TODO(synk): the real `patchmixer`/`msg_processor` submodules are not in the
    # provided source; a canonical patch-mixer with linear msg embedding is used.
    print("KERNEL_OK")
</pallas_src>

<mosaic_0001>
module attributes {stable_mosaic.version = 11 : i64} {
  func.func @patchmixer_kernel(%arg0: i32, %arg1: memref<32x128xf32, #tpu.memory_space<vmem>>, %arg2: memref<584x128xf32, #tpu.memory_space<vmem>>, %arg3: memref<32x128xf32, #tpu.memory_space<vmem>>) attributes {dimension_semantics = [#tpu.dimension_semantics<arbitrary>], iteration_bounds = array<i64: 1>, scalar_prefetch = 0 : i64, scratch_operands = 0 : i64, tpu.core_type = #tpu.core_type<tc>, window_params = [{pipeline_mode = #tpu.pipeline_mode<synchronous>, transform_indices = @transform_0, window_bounds = array<i64: 32, 128>}, {pipeline_mode = #tpu.pipeline_mode<synchronous>, transform_indices = @transform_1, window_bounds = array<i64: 584, 128>}, {pipeline_mode = #tpu.pipeline_mode<synchronous>, transform_indices = @transform_2, window_bounds = array<i64: 32, 128>}]} {
    %c0 = arith.constant 0 : index
    %c0_0 = arith.constant 0 : index
    %0 = vector.load %arg1[%c0, %c0_0] : memref<32x128xf32, #tpu.memory_space<vmem>>, vector<32x128xf32>
    %c0_1 = arith.constant 0 : index
    %c0_2 = arith.constant 0 : index
    %1 = vector.load %arg2[%c0_1, %c0_2] : memref<584x128xf32, #tpu.memory_space<vmem>>, vector<128x128xf32>
    %cst = arith.constant dense<0.000000e+00> : vector<32x128xf32>
    %2 = tpu.matmul %0, %1, %cst {dimension_numbers = #tpu.dot_dimension_numbers<[1], [0], [0], [1], [0, 0, 1, 1], [], []>} : vector<32x128xf32>, vector<128x128xf32>, vector<32x128xf32> -> vector<32x128xf32>
    %c128 = arith.constant 128 : index
    %c0_3 = arith.constant 0 : index
    %3 = vector.load %arg2[%c128, %c0_3] : memref<584x128xf32, #tpu.memory_space<vmem>>, vector<32x32xf32>
    %c160 = arith.constant 160 : index
    %c0_4 = arith.constant 0 : index
    %4 = vector.load %arg2[%c160, %c0_4] : memref<584x128xf32, #tpu.memory_space<vmem>>, vector<32x32xf32>
    %cst_5 = arith.constant dense<0.000000e+00> : vector<32x128xf32>
    %5 = tpu.matmul %3, %2, %cst_5 {dimension_numbers = #tpu.dot_dimension_numbers<[1], [0], [0], [1], [0, 0, 1, 1], [], []>} : vector<32x32xf32>, vector<32x128xf32>, vector<32x128xf32> -> vector<32x128xf32>
    %6 = arith.mulf %5, %5 : vector<32x128xf32>
    %7 = arith.mulf %5, %6 : vector<32x128xf32>
    %cst_6 = arith.constant 4.471500e-02 : f32
    %8 = vector.broadcast %cst_6 : f32 to vector<32x128xf32>
    %9 = arith.mulf %8, %7 : vector<32x128xf32>
    %10 = arith.addf %5, %9 : vector<32x128xf32>
    %cst_7 = arith.constant 0.797884583 : f32
    %11 = vector.broadcast %cst_7 : f32 to vector<32x128xf32>
    %12 = arith.mulf %11, %10 : vector<32x128xf32>
    %13 = math.tanh %12 : vector<32x128xf32>
    %cst_8 = arith.constant 1.000000e+00 : f32
    %14 = vector.broadcast %cst_8 : f32 to vector<32x128xf32>
    %15 = arith.addf %14, %13 : vector<32x128xf32>
    %cst_9 = arith.constant 5.000000e-01 : f32
    %16 = vector.broadcast %cst_9 : f32 to vector<32x128xf32>
    %17 = arith.mulf %16, %15 : vector<32x128xf32>
    %18 = arith.mulf %5, %17 : vector<32x128xf32>
    %cst_10 = arith.constant dense<0.000000e+00> : vector<32x128xf32>
    %19 = tpu.matmul %4, %18, %cst_10 {dimension_numbers = #tpu.dot_dimension_numbers<[1], [0], [0], [1], [0, 0, 1, 1], [], []>} : vector<32x32xf32>, vector<32x128xf32>, vector<32x128xf32> -> vector<32x128xf32>
    %20 = arith.addf %2, %19 : vector<32x128xf32>
    %c192 = arith.constant 192 : index
    %c0_11 = arith.constant 0 : index
    %21 = vector.load %arg2[%c192, %c0_11] : memref<584x128xf32, #tpu.memory_space<vmem>>, vector<128x128xf32>
    %c320 = arith.constant 320 : index
    %c0_12 = arith.constant 0 : index
    %22 = vector.load %arg2[%c320, %c0_12] : memref<584x128xf32, #tpu.memory_space<vmem>>, vector<128x128xf32>
    %cst_13 = arith.constant dense<0.000000e+00> : vector<32x128xf32>
    %23 = tpu.matmul %20, %21, %cst_13 {dimension_numbers = #tpu.dot_dimension_numbers<[1], [0], [0], [1], [0, 0, 1, 1], [], []>} : vector<32x128xf32>, vector<128x128xf32>, vector<32x128xf32> -> vector<32x128xf32>
    %24 = arith.mulf %23, %23 : vector<32x128xf32>
    %25 = arith.mulf %23, %24 : vector<32x128xf32>
    %cst_14 = arith.constant 4.471500e-02 : f32
    %26 = vector.broadcast %cst_14 : f32 to vector<32x128xf32>
    %27 = arith.mulf %26, %25 : vector<32x128xf32>
    %28 = arith.addf %23, %27 : vector<32x128xf32>
    %cst_15 = arith.constant 0.797884583 : f32
    %29 = vector.broadcast %cst_15 : f32 to vector<32x128xf32>
    %30 = arith.mulf %29, %28 : vector<32x128xf32>
    %31 = math.tanh %30 : vector<32x128xf32>
    %cst_16 = arith.constant 1.000000e+00 : f32
    %32 = vector.broadcast %cst_16 : f32 to vector<32x128xf32>
    %33 = arith.addf %32, %31 : vector<32x128xf32>
    %cst_17 = arith.constant 5.000000e-01 : f32
    %34 = vector.broadcast %cst_17 : f32 to vector<32x128xf32>
    %35 = arith.mulf %34, %33 : vector<32x128xf32>
    %36 = arith.mulf %23, %35 : vector<32x128xf32>
    %cst_18 = arith.constant dense<0.000000e+00> : vector<32x128xf32>
    %37 = tpu.matmul %36, %22, %cst_18 {dimension_numbers = #tpu.dot_dimension_numbers<[1], [0], [0], [1], [0, 0, 1, 1], [], []>} : vector<32x128xf32>, vector<128x128xf32>, vector<32x128xf32> -> vector<32x128xf32>
    %38 = arith.addf %20, %37 : vector<32x128xf32>
    %c448 = arith.constant 448 : index
    %c0_19 = arith.constant 0 : index
    %39 = vector.load %arg2[%c448, %c0_19] : memref<584x128xf32, #tpu.memory_space<vmem>>, vector<128x128xf32>
    %c576 = arith.constant 576 : index
    %c0_20 = arith.constant 0 : index
    %40 = vector.load %arg2[%c576, %c0_20] : memref<584x128xf32, #tpu.memory_space<vmem>>, vector<1x128xf32>
    %cst_21 = arith.constant dense<0.000000e+00> : vector<32x128xf32>
    %41 = tpu.matmul %38, %39, %cst_21 {dimension_numbers = #tpu.dot_dimension_numbers<[1], [0], [0], [1], [0, 0, 1, 1], [], []>} : vector<32x128xf32>, vector<128x128xf32>, vector<32x128xf32> -> vector<32x128xf32>
    %42 = vector.broadcast %40 : vector<1x128xf32> to vector<32x128xf32>
    %43 = arith.addf %41, %42 : vector<32x128xf32>
    %c0_22 = arith.constant 0 : index
    %c0_23 = arith.constant 0 : index
    %44 = vector.load %arg3[%c0_22, %c0_23] : memref<32x128xf32, #tpu.memory_space<vmem>>, vector<32x128xf32>
    tpu.vector_store %arg3[%c0_22, %c0_23], %43 {strides = array<i32>} : memref<32x128xf32, #tpu.memory_space<vmem>>, vector<32x128xf32>,
    return
  }
  func.func @transform_0(%arg0: i32) -> (i32, i32) {
    %c0_i32 = arith.constant 0 : i32
    %c0_i32_0 = arith.constant 0 : i32
    %c0_i32_1 = arith.constant 0 : i32
    return %c0_i32, %c0_i32_0 : i32, i32
  }
  func.func @transform_1(%arg0: i32) -> (i32, i32) {
    %c0_i32 = arith.constant 0 : i32
    %c0_i32_0 = arith.constant 0 : i32
    %c0_i32_1 = arith.constant 0 : i32
    return %c0_i32, %c0_i32_0 : i32, i32
  }
  func.func @transform_2(%arg0: i32) -> (i32, i32) {
    %c0_i32 = arith.constant 0 : i32
    %c0_i32_0 = arith.constant 0 : i32
    %c0_i32_1 = arith.constant 0 : i32
    return %c0_i32, %c0_i32_0 : i32, i32
  }
}

</mosaic_0001>

<llo_original>
// kernel: patchmixer_embedder_forward.1
$region0: #{patchmixer_embedder_forward.1}
  #allocation0 [shape = 'u32[]', space=smem, size = 0x4, offset = 0x4, fixed_abs, tag = 'smem constant byte address 0x4 - core index']
  #allocation1 [shape = 'u32[144,128]{1,0:T(1,128)}', space=vmem, size = 0x12000, scoped, tag = 'internal scratch']
  %s0 = inlined_call_operand.vmem [shape: f32[32,128], index: 0, kind: input, shape index: {}]
  %s1 = inlined_call_operand.vmem [shape: f32[584,128], index: 1, kind: input, shape index: {}]
  %s2 = inlined_call_operand.vmem [shape: f32[32,128], index: 2, kind: output, shape index: {}]
  %s3 = sld [smem:[#allocation0]]
  $region18: #{patchmixer_embedder_forward.1} parent=0
    _
  %s5 = ssub.s32 1, %s3
  %s6 = scalar_select 0, %s5, %s3
  // Predicated region
  $region2: #{patchmixer_embedder_forward.1} parent=0 // pred_check
    _
  $region3: #{patchmixer_embedder_forward.1} parent=0 // pred_check_branch
    %8 = sbr.rel (0) target = $region5
  $region4: #{patchmixer_embedder_forward.1} parent=0 // pred_region
    _
  $region5: #{patchmixer_embedder_forward.1} parent=0 // pred_fallthru
    _
  // Predicated region
  $region6: #{patchmixer_embedder_forward.1} parent=0 // pred_check
    _
  $region7: #{patchmixer_embedder_forward.1} parent=0 // pred_check_branch
    %10 = sbr.rel (0) target = $region9
  $region8: #{patchmixer_embedder_forward.1} parent=0 // pred_region
    _
  $region9: #{patchmixer_embedder_forward.1} parent=0 // pred_fallthru
    _
  %v11 = vld [vmem:[%s0] sm:$0xff]
  %v12 = vld [vmem:[%s0 + $0x8] sm:$0xff]
  %v13 = vld [vmem:[%s0 + $0x10] sm:$0xff]
  %v14 = vld [vmem:[%s0 + $0x18] sm:$0xff]
  %v15 = vld [vmem:[%s1] sm:$0xff]
  %v16 = vld [vmem:[%s1 + $0x8] sm:$0xff]
  %v17 = vld [vmem:[%s1 + $0x10] sm:$0xff]
  %v18 = vld [vmem:[%s1 + $0x18] sm:$0xff]
  %v19 = vld [vmem:[%s1 + $0x20] sm:$0xff]
  %v20 = vld [vmem:[%s1 + $0x28] sm:$0xff]
  %v21 = vld [vmem:[%s1 + $0x30] sm:$0xff]
  %v22 = vld [vmem:[%s1 + $0x38] sm:$0xff]
  %v23 = vld [vmem:[%s1 + $0x40] sm:$0xff]
  %v24 = vld [vmem:[%s1 + $0x48] sm:$0xff]
  %v25 = vld [vmem:[%s1 + $0x50] sm:$0xff]
  %v26 = vld [vmem:[%s1 + $0x58] sm:$0xff]
  %v27 = vld [vmem:[%s1 + $0x60] sm:$0xff]
  %v28 = vld [vmem:[%s1 + $0x68] sm:$0xff]
  %v29 = vld [vmem:[%s1 + $0x70] sm:$0xff]
  %v30 = vld [vmem:[%s1 + $0x78] sm:$0xff]
  %31 = vmatprep.subr.mxu0 0.0
  %32 = vmatpush1.msra.mxu0 %v30
  %33 = vmatprep.subr.mxu0 0.0
  %34 = vmatpush1.msra.mxu0 %v29
  %35 = vmatprep.subr.mxu0 0.0
  %36 = vmatpush1.msra.mxu0 %v28
  %37 = vmatprep.subr.mxu0 0.0
  %38 = vmatpush1.msra.mxu0 %v27
  %39 = vmatprep.subr.mxu0 0.0
  %40 = vmatpush1.msra.mxu0 %v26
  %41 = vmatprep.subr.mxu0 0.0
  %42 = vmatpush1.msra.mxu0 %v25
  %43 = vmatprep.subr.mxu0 0.0
  %44 = vmatpush1.msra.mxu0 %v24
  %45 = vmatprep.subr.mxu0 0.0
  %46 = vmatpush1.msra.mxu0 %v23
  %47 = vmatprep.subr.mxu0 0.0
  %48 = vmatpush1.msra.mxu0 %v22
  %49 = vmatprep.subr.mxu0 0.0
  %50 = vmatpush1.msra.mxu0 %v21
  %51 = vmatprep.subr.mxu0 0.0
  %52 = vmatpush1.msra.mxu0 %v20
  %53 = vmatprep.subr.mxu0 0.0
  %54 = vmatpush1.msra.mxu0 %v19
  %55 = vmatprep.subr.mxu0 0.0
  %56 = vmatpush1.msra.mxu0 %v18
  %57 = vmatprep.subr.mxu0 0.0
  %58 = vmatpush1.msra.mxu0 %v17
  %59 = vmatprep.subr.mxu0 0.0
  %60 = vmatpush1.msra.mxu0 %v16
  %61 = vmatprep.subr.mxu0 0.0
  %62 = vmatpush1.msra.mxu0 %v15
  %63 = vmatprep.subr.mxu0 0.0
  %64 = vmatpush2.msra.mxu0 0.0
  %65 = vmatprep.subr.mxu0 0.0
  %66 = vmatpush2.msra.mxu0 0.0
  %67 = vmatprep.subr.mxu0 0.0
  %68 = vmatpush2.msra.mxu0 0.0
  %69 = vmatprep.subr.mxu0 0.0
  %70 = vmatpush2.msra.mxu0 0.0
  %71 = vmatprep.subr.mxu0 0.0
  %72 = vmatpush2.msra.mxu0 0.0
  %73 = vmatprep.subr.mxu0 0.0
  %74 = vmatpush2.msra.mxu0 0.0
  %75 = vmatprep.subr.mxu0 0.0
  %76 = vmatpush2.msra.mxu0 0.0
  %77 = vmatprep.subr.mxu0 0.0
  %78 = vmatpush2.msra.mxu0 0.0
  %79 = vmatprep.subr.mxu0 0.0
  %80 = vmatpush2.msra.mxu0 0.0
  %81 = vmatprep.subr.mxu0 0.0
  %82 = vmatpush2.msra.mxu0 0.0
  %83 = vmatprep.subr.mxu0 0.0
  %84 = vmatpush2.msra.mxu0 0.0
  %85 = vmatprep.subr.mxu0 0.0
  %86 = vmatpush2.msra.mxu0 0.0
  %87 = vmatprep.subr.mxu0 0.0
  %88 = vmatpush2.msra.mxu0 0.0
  %89 = vmatprep.subr.mxu0 0.0
  %90 = vmatpush2.msra.mxu0 0.0
  %91 = vmatprep.subr.mxu0 0.0
  %92 = vmatpush2.msra.mxu0 0.0
  %93 = vmatprep.subr.mxu0 0.0
  %94 = vmatpush2.msra.mxu0 0.0
  %95 = vmatprep.mubr.f32.mxu0 0.0
  %96 = vmatmul.mubr.f32.gmra.mxu0 %v11
  %v97 = vpop.f32.mrf.mxu0
  %v98 = vadd.f32 0.0, %v97
  %v99 = vpop.f32.mrf.mxu0
  %100 = vmatprep.mubr.f32.mxu0 0.0
  %101 = vmatmul.mubr.f32.gmra.mxu0 %v12
  %v102 = vpop.f32.mrf.mxu0
  %v103 = vadd.f32 0.0, %v102
  %v104 = vpop.f32.mrf.mxu0
  %105 = vmatprep.mubr.f32.mxu0 0.0
  %106 = vmatmul.mubr.f32.gmra.mxu0 %v13
  %v107 = vpop.f32.mrf.mxu0
  %v108 = vadd.f32 0.0, %v107
  %v109 = vpop.f32.mrf.mxu0
  %110 = vmatprep.mubr.f32.mxu0 0.0
  %111 = vmatmul.mubr.f32.gmra.mxu0 %v14
  %v112 = vpop.f32.mrf.mxu0
  %v113 = vadd.f32 0.0, %v112
  %v114 = vpop.f32.mrf.mxu0
  %115 = vdwg.mxu0
  %v116 = vld [vmem:[%s1 + $0x80] sm:$0xff]
  %v117 = vld [vmem:[%s1 + $0x88] sm:$0xff]
  %v118 = vld [vmem:[%s1 + $0x90] sm:$0xff]
  %v119 = vld [vmem:[%s1 + $0x98] sm:$0xff]
  %v120 = vld [vmem:[%s1 + $0xa0] sm:$0xff]
  %v121 = vld [vmem:[%s1 + $0xa8] sm:$0xff]
  %v122 = vld [vmem:[%s1 + $0xb0] sm:$0xff]
  %v123 = vld [vmem:[%s1 + $0xb8] sm:$0xff]
  %vm124 = vcmask 261120
  %v126 = vsel %vm124, %v116, 0
  %v129 = vsel %vm124, %v117, 0
  %v132 = vsel %vm124, %v118, 0
  %v135 = vsel %vm124, %v119, 0
  %137 = vmatprep.subr.mxu0 0.0
  %138 = vmatpush1.msra.mxu0 0.0
  %139 = vmatprep.subr.mxu0 0.0
  %140 = vmatpush1.msra.mxu0 0.0
  %141 = vmatprep.subr.mxu0 0.0
  %142 = vmatpush1.msra.mxu0 0.0
  %143 = vmatprep.subr.mxu0 0.0
  %144 = vmatpush1.msra.mxu0 0.0
  %145 = vmatprep.subr.mxu0 0.0
  %146 = vmatpush1.msra.mxu0 0.0
  %147 = vmatprep.subr.mxu0 0.0
  %148 = vmatpush1.msra.mxu0 0.0
  %149 = vmatprep.subr.mxu0 0.0
  %150 = vmatpush1.msra.mxu0 0.0
  %151 = vmatprep.subr.mxu0 0.0
  %152 = vmatpush1.msra.mxu0 0.0
  %153 = vmatprep.subr.mxu0 0.0
  %154 = vmatpush1.msra.mxu0 0.0
  %155 = vmatprep.subr.mxu0 0.0
  %156 = vmatpush1.msra.mxu0 0.0
  %157 = vmatprep.subr.mxu0 0.0
  %158 = vmatpush1.msra.mxu0 0.0
  %159 = vmatprep.subr.mxu0 0.0
  %160 = vmatpush1.msra.mxu0 0.0
  %161 = vmatprep.subr.mxu0 0.0
  %162 = vmatpush1.msra.mxu0 %v113
  %163 = vmatprep.subr.mxu0 0.0
  %164 = vmatpush1.msra.mxu0 %v108
  %165 = vmatprep.subr.mxu0 0.0
  %166 = vmatpush1.msra.mxu0 %v103
  %167 = vmatprep.subr.mxu0 0.0
  %168 = vmatpush1.msra.mxu0 %v98
  %169 = vmatprep.subr.mxu0 0.0
  %170 = vmatpush2.msra.mxu0 0.0
  %171 = vmatprep.subr.mxu0 0.0
  %172 = vmatpush2.msra.mxu0 0.0
  %173 = vmatprep.subr.mxu0 0.0
  %174 = vmatpush2.msra.mxu0 0.0
  %175 = vmatprep.subr.mxu0 0.0
  %176 = vmatpush2.msra.mxu0 0.0
  %177 = vmatprep.subr.mxu0 0.0
  %178 = vmatpush2.msra.mxu0 0.0
  %179 = vmatprep.subr.mxu0 0.0
  %180 = vmatpush2.msra.mxu0 0.0
  %181 = vmatprep.subr.mxu0 0.0
  %182 = vmatpush2.msra.mxu0 0.0
  %183 = vmatprep.subr.mxu0 0.0
  %184 = vmatpush2.msra.mxu0 0.0
  %185 = vmatprep.subr.mxu0 0.0
  %186 = vmatpush2.msra.mxu0 0.0
  %187 = vmatprep.subr.mxu0 0.0
  %188 = vmatpush2.msra.mxu0 0.0
  %189 = vmatprep.subr.mxu0 0.0
  %190 = vmatpush2.msra.mxu0 0.0
  %191 = vmatprep.subr.mxu0 0.0
  %192 = vmatpush2.msra.mxu0 0.0
  %193 = vmatprep.subr.mxu0 0.0
  %194 = vmatpush2.msra.mxu0 0.0
  %195 = vmatprep.subr.mxu0 0.0
  %196 = vmatpush2.msra.mxu0 0.0
  %197 = vmatprep.subr.mxu0 0.0
  %198 = vmatpush2.msra.mxu0 0.0
  %199 = vmatprep.subr.mxu0 0.0
  %200 = vmatpush2.msra.mxu0 0.0
  %201 = vmatprep.mubr.f32.mxu0 0.0
  %202 = vmatmul.mubr.f32.gmra.mxu0 %v126
  %v203 = vpop.f32.mrf.mxu0
  %v204 = vadd.f32 0.0, %v203
  %v205 = vpop.f32.mrf.mxu0
  %206 = vmatprep.mubr.f32.mxu0 0.0
  %207 = vmatmul.mubr.f32.gmra.mxu0 %v129
  %v208 = vpop.f32.mrf.mxu0
  %v209 = vadd.f32 0.0, %v208
  %v210 = vpop.f32.mrf.mxu0
  %211 = vmatprep.mubr.f32.mxu0 0.0
  %212 = vmatmul.mubr.f32.gmra.mxu0 %v132
  %v213 = vpop.f32.mrf.mxu0
  %v214 = vadd.f32 0.0, %v213
  %v215 = vpop.f32.mrf.mxu0
  %216 = vmatprep.mubr.f32.mxu0 0.0
  %217 = vmatmul.mubr.f32.gmra.mxu0 %v135
  %v218 = vpop.f32.mrf.mxu0
  %v219 = vadd.f32 0.0, %v218
  %v220 = vpop.f32.mrf.mxu0
  %221 = vdwg.mxu0
  %v222 = vmul.f32 %v204, %v204
  %v223 = vmul.f32 %v209, %v209
  %v224 = vmul.f32 %v214, %v214
  %v225 = vmul.f32 %v219, %v219
  %v226 = vmul.f32 %v204, %v222
  %v227 = vmul.f32 %v209, %v223
  %v228 = vmul.f32 %v214, %v224
  %v229 = vmul.f32 %v219, %v225
  %v230 = vmul.f32 %v226, 0.044715
  %v231 = vmul.f32 %v227, 0.044715
  %v232 = vmul.f32 %v228, 0.044715
  %v233 = vmul.f32 %v229, 0.044715
  %v234 = vadd.f32 %v204, %v230
  %v235 = vadd.f32 %v209, %v231
  %v236 = vadd.f32 %v214, %v232
  %v237 = vadd.f32 %v219, %v233
  %v238 = vmul.f32 %v234, 0.7978846
  %v239 = vmul.f32 %v235, 0.7978846
  %v240 = vmul.f32 %v236, 0.7978846
  %v241 = vmul.f32 %v237, 0.7978846
  %v242 = vtanh.pop %v238
  %v243 = vtanh.pop %v239
  %v244 = vtanh.pop %v240
  %v245 = vtanh.pop %v241
  %v246 = vadd.f32 %v242, 1.0
  %v247 = vadd.f32 %v243, 1.0
  %v248 = vadd.f32 %v244, 1.0
  %v249 = vadd.f32 %v245, 1.0
  %v250 = vmul.f32 %v246, 0.5
  %v251 = vmul.f32 %v247, 0.5
  %v252 = vmul.f32 %v248, 0.5
  %v253 = vmul.f32 %v249, 0.5
  %v254 = vmul.f32 %v204, %v250
  %v255 = vmul.f32 %v209, %v251
  %v256 = vmul.f32 %v214, %v252
  %v257 = vmul.f32 %v219, %v253
  %v259 = vsel %vm124, %v120, 0
  %v262 = vsel %vm124, %v121, 0
  %v265 = vsel %vm124, %v122, 0
  %v268 = vsel %vm124, %v123, 0
  %270 = vmatprep.subr.mxu0 0.0
  %271 = vmatpush1.msra.mxu0 0.0
  %272 = vmatprep.subr.mxu0 0.0
  %273 = vmatpush1.msra.mxu0 0.0
  %274 = vmatprep.subr.mxu0 0.0
  %275 = vmatpush1.msra.mxu0 0.0
  %276 = vmatprep.subr.mxu0 0.0
  %277 = vmatpush1.msra.mxu0 0.0
  %278 = vmatprep.subr.mxu0 0.0
  %279 = vmatpush1.msra.mxu0 0.0
  %280 = vmatprep.subr.mxu0 0.0
  %281 = vmatpush1.msra.mxu0 0.0
  %282 = vmatprep.subr.mxu0 0.0
  %283 = vmatpush1.msra.mxu0 0.0
  %284 = vmatprep.subr.mxu0 0.0
  %285 = vmatpush1.msra.mxu0 0.0
  %286 = vmatprep.subr.mxu0 0.0
  %287 = vmatpush1.msra.mxu0 0.0
  %288 = vmatprep.subr.mxu0 0.0
  %289 = vmatpush1.msra.mxu0 0.0
  %290 = vmatprep.subr.mxu0 0.0
  %291 = vmatpush1.msra.mxu0 0.0
  %292 = vmatprep.subr.mxu0 0.0
  %293 = vmatpush1.msra.mxu0 0.0
  %294 = vmatprep.subr.mxu0 0.0
  %295 = vmatpush1.msra.mxu0 %v257
  %296 = vmatprep.subr.mxu0 0.0
  %297 = vmatpush1.msra.mxu0 %v256
  %298 = vmatprep.subr.mxu0 0.0
  %299 = vmatpush1.msra.mxu0 %v255
  %300 = vmatprep.subr.mxu0 0.0
  %301 = vmatpush1.msra.mxu0 %v254
  %302 = vmatprep.subr.mxu0 0.0
  %303 = vmatpush2.msra.mxu0 0.0
  %304 = vmatprep.subr.mxu0 0.0
  %305 = vmatpush2.msra.mxu0 0.0
  %306 = vmatprep.subr.mxu0 0.0
  %307 = vmatpush2.msra.mxu0 0.0
  %308 = vmatprep.subr.mxu0 0.0
  %309 = vmatpush2.msra.mxu0 0.0
  %310 = vmatprep.subr.mxu0 0.0
  %311 = vmatpush2.msra.mxu0 0.0
  %312 = vmatprep.subr.mxu0 0.0
  %313 = vmatpush2.msra.mxu0 0.0
  %314 = vmatprep.subr.mxu0 0.0
  %315 = vmatpush2.msra.mxu0 0.0
  %316 = vmatprep.subr.mxu0 0.0
  %317 = vmatpush2.msra.mxu0 0.0
  %318 = vmatprep.subr.mxu0 0.0
  %319 = vmatpush2.msra.mxu0 0.0
  %320 = vmatprep.subr.mxu0 0.0
  %321 = vmatpush2.msra.mxu0 0.0
  %322 = vmatprep.subr.mxu0 0.0
  %323 = vmatpush2.msra.mxu0 0.0
  %324 = vmatprep.subr.mxu0 0.0
  %325 = vmatpush2.msra.mxu0 0.0
  %326 = vmatprep.subr.mxu0 0.0
  %327 = vmatpush2.msra.mxu0 0.0
  %328 = vmatprep.subr.mxu0 0.0
  %329 = vmatpush2.msra.mxu0 0.0
  %330 = vmatprep.subr.mxu0 0.0
  %331 = vmatpush2.msra.mxu0 0.0
  %332 = vmatprep.subr.mxu0 0.0
  %333 = vmatpush2.msra.mxu0 0.0
  %334 = vmatprep.mubr.f32.mxu0 0.0
  %335 = vmatmul.mubr.f32.gmra.mxu0 %v259
  %v336 = vpop.f32.mrf.mxu0
  %v337 = vadd.f32 0.0, %v336
  %v338 = vpop.f32.mrf.mxu0
  %339 = vmatprep.mubr.f32.mxu0 0.0
  %340 = vmatmul.mubr.f32.gmra.mxu0 %v262
  %v341 = vpop.f32.mrf.mxu0
  %v342 = vadd.f32 0.0, %v341
  %v343 = vpop.f32.mrf.mxu0
  %344 = vmatprep.mubr.f32.mxu0 0.0
  %345 = vmatmul.mubr.f32.gmra.mxu0 %v265
  %v346 = vpop.f32.mrf.mxu0
  %v347 = vadd.f32 0.0, %v346
  %v348 = vpop.f32.mrf.mxu0
  %349 = vmatprep.mubr.f32.mxu0 0.0
  %350 = vmatmul.mubr.f32.gmra.mxu0 %v268
  %v351 = vpop.f32.mrf.mxu0
  %v352 = vadd.f32 0.0, %v351
  %v353 = vpop.f32.mrf.mxu0
  %354 = vdwg.mxu0
  %v355 = vadd.f32 %v98, %v337
  %v356 = vadd.f32 %v103, %v342
  %v357 = vadd.f32 %v108, %v347
  %v358 = vadd.f32 %v113, %v352
  %v359 = vld [vmem:[%s1 + $0xc0] sm:$0xff]
  %v360 = vld [vmem:[%s1 + $0xc8] sm:$0xff]
  %v361 = vld [vmem:[%s1 + $0xd0] sm:$0xff]
  %v362 = vld [vmem:[%s1 + $0xd8] sm:$0xff]
  %v363 = vld [vmem:[%s1 + $0xe0] sm:$0xff]
  %v364 = vld [vmem:[%s1 + $0xe8] sm:$0xff]
  %v365 = vld [vmem:[%s1 + $0xf0] sm:$0xff]
  %v366 = vld [vmem:[%s1 + $0xf8] sm:$0xff]
  %v367 = vld [vmem:[%s1 + $0x100] sm:$0xff]
  %v368 = vld [vmem:[%s1 + $0x108] sm:$0xff]
  %v369 = vld [vmem:[%s1 + $0x110] sm:$0xff]
  %v370 = vld [vmem:[%s1 + $0x118] sm:$0xff]
  %v371 = vld [vmem:[%s1 + $0x120] sm:$0xff]
  %v372 = vld [vmem:[%s1 + $0x128] sm:$0xff]
  %v373 = vld [vmem:[%s1 + $0x130] sm:$0xff]
  %v374 = vld [vmem:[%s1 + $0x138] sm:$0xff]
  %v375 = vld [vmem:[%s1 + $0x140] sm:$0xff]
  %v376 = vld [vmem:[%s1 + $0x148] sm:$0xff]
  %v377 = vld [vmem:[%s1 + $0x150] sm:$0xff]
  %v378 = vld [vmem:[%s1 + $0x158] sm:$0xff]
  %v379 = vld [vmem:[%s1 + $0x160] sm:$0xff]
  %v380 = vld [vmem:[%s1 + $0x168] sm:$0xff]
  %v381 = vld [vmem:[%s1 + $0x170] sm:$0xff]
  %v382 = vld [vmem:[%s1 + $0x178] sm:$0xff]
  %v383 = vld [vmem:[%s1 + $0x180] sm:$0xff]
  %v384 = vld [vmem:[%s1 + $0x188] sm:$0xff]
  %v385 = vld [vmem:[%s1 + $0x190] sm:$0xff]
  %v386 = vld [vmem:[%s1 + $0x198] sm:$0xff]
  %v387 = vld [vmem:[%s1 + $0x1a0] sm:$0xff]
  %v388 = vld [vmem:[%s1 + $0x1a8] sm:$0xff]
  %v389 = vld [vmem:[%s1 + $0x1b0] sm:$0xff]
  %v390 = vld [vmem:[%s1 + $0x1b8] sm:$0xff]
  %391 = vmatprep.subr.mxu0 0.0
  %392 = vmatpush1.msra.mxu0 %v374
  %393 = vmatprep.subr.mxu0 0.0
  %394 = vmatpush1.msra.mxu0 %v373
  %395 = vmatprep.subr.mxu0 0.0
  %396 = vmatpush1.msra.mxu0 %v372
  %397 = vmatprep.subr.mxu0 0.0
  %398 = vmatpush1.msra.mxu0 %v371
  %399 = vmatprep.subr.mxu0 0.0
  %400 = vmatpush1.msra.mxu0 %v370
  %401 = vmatprep.subr.mxu0 0.0
  %402 = vmatpush1.msra.mxu0 %v369
  %403 = vmatprep.subr.mxu0 0.0
  %404 = vmatpush1.msra.mxu0 %v368
  %405 = vmatprep.subr.mxu0 0.0
  %406 = vmatpush1.msra.mxu0 %v367
  %407 = vmatprep.subr.mxu0 0.0
  %408 = vmatpush1.msra.mxu0 %v366
  %409 = vmatprep.subr.mxu0 0.0
  %410 = vmatpush1.msra.mxu0 %v365
  %411 = vmatprep.subr.mxu0 0.0
  %412 = vmatpush1.msra.mxu0 %v364
  %413 = vmatprep.subr.mxu0 0.0
  %414 = vmatpush1.msra.mxu0 %v363
  %415 = vmatprep.subr.mxu0 0.0
  %416 = vmatpush1.msra.mxu0 %v362
  %417 = vmatprep.subr.mxu0 0.0
  %418 = vmatpush1.msra.mxu0 %v361
  %419 = vmatprep.subr.mxu0 0.0
  %420 = vmatpush1.msra.mxu0 %v360
  %421 = vmatprep.subr.mxu0 0.0
  %422 = vmatpush1.msra.mxu0 %v359
  %423 = vmatprep.subr.mxu0 0.0
  %424 = vmatpush2.msra.mxu0 0.0
  %425 = vmatprep.subr.mxu0 0.0
  %426 = vmatpush2.msra.mxu0 0.0
  %427 = vmatprep.subr.mxu0 0.0
  %428 = vmatpush2.msra.mxu0 0.0
  %429 = vmatprep.subr.mxu0 0.0
  %430 = vmatpush2.msra.mxu0 0.0
  %431 = vmatprep.subr.mxu0 0.0
  %432 = vmatpush2.msra.mxu0 0.0
  %433 = vmatprep.subr.mxu0 0.0
  %434 = vmatpush2.msra.mxu0 0.0
  %435 = vmatprep.subr.mxu0 0.0
  %436 = vmatpush2.msra.mxu0 0.0
  %437 = vmatprep.subr.mxu0 0.0
  %438 = vmatpush2.msra.mxu0 0.0
  %439 = vmatprep.subr.mxu0 0.0
  %440 = vmatpush2.msra.mxu0 0.0
  %441 = vmatprep.subr.mxu0 0.0
  %442 = vmatpush2.msra.mxu0 0.0
  %443 = vmatprep.subr.mxu0 0.0
  %444 = vmatpush2.msra.mxu0 0.0
  %445 = vmatprep.subr.mxu0 0.0
  %446 = vmatpush2.msra.mxu0 0.0
  %447 = vmatprep.subr.mxu0 0.0
  %448 = vmatpush2.msra.mxu0 0.0
  %449 = vmatprep.subr.mxu0 0.0
  %450 = vmatpush2.msra.mxu0 0.0
  %451 = vmatprep.subr.mxu0 0.0
  %452 = vmatpush2.msra.mxu0 0.0
  %453 = vmatprep.subr.mxu0 0.0
  %454 = vmatpush2.msra.mxu0 0.0
  %455 = vmatprep.mubr.f32.mxu0 0.0
  %456 = vmatmul.mubr.f32.gmra.mxu0 %v355
  %v457 = vpop.f32.mrf.mxu0
  %v458 = vadd.f32 0.0, %v457
  %v459 = vpop.f32.mrf.mxu0
  %460 = vmatprep.mubr.f32.mxu0 0.0
  %461 = vmatmul.mubr.f32.gmra.mxu0 %v356
  %v462 = vpop.f32.mrf.mxu0
  %v463 = vadd.f32 0.0, %v462
  %v464 = vpop.f32.mrf.mxu0
  %465 = vmatprep.mubr.f32.mxu0 0.0
  %466 = vmatmul.mubr.f32.gmra.mxu0 %v357
  %v467 = vpop.f32.mrf.mxu0
  %v468 = vadd.f32 0.0, %v467
  %v469 = vpop.f32.mrf.mxu0
  %470 = vmatprep.mubr.f32.mxu0 0.0
  %471 = vmatmul.mubr.f32.gmra.mxu0 %v358
  %v472 = vpop.f32.mrf.mxu0
  %v473 = vadd.f32 0.0, %v472
  %v474 = vpop.f32.mrf.mxu0
  %475 = vdwg.mxu0
  %v476 = vmul.f32 %v458, %v458
  %v477 = vmul.f32 %v463, %v463
  %v478 = vmul.f32 %v468, %v468
  %v479 = vmul.f32 %v473, %v473
  %v480 = vmul.f32 %v458, %v476
  %v481 = vmul.f32 %v463, %v477
  %v482 = vmul.f32 %v468, %v478
  %v483 = vmul.f32 %v473, %v479
  %v484 = vmul.f32 %v480, 0.044715
  %v485 = vmul.f32 %v481, 0.044715
  %v486 = vmul.f32 %v482, 0.044715
  %v487 = vmul.f32 %v483, 0.044715
  %v488 = vadd.f32 %v458, %v484
  %v489 = vadd.f32 %v463, %v485
  %v490 = vadd.f32 %v468, %v486
  %v491 = vadd.f32 %v473, %v487
  %v492 = vmul.f32 %v488, 0.7978846
  %v493 = vmul.f32 %v489, 0.7978846
  %v494 = vmul.f32 %v490, 0.7978846
  %v495 = vmul.f32 %v491, 0.7978846
  %v496 = vtanh.pop %v492
  %v497 = vtanh.pop %v493
  %v498 = vtanh.pop %v494
  %v499 = vtanh.pop %v495
  %v500 = vadd.f32 %v496, 1.0
  %v501 = vadd.f32 %v497, 1.0
  %v502 = vadd.f32 %v498, 1.0
  %v503 = vadd.f32 %v499, 1.0
  %v504 = vmul.f32 %v500, 0.5
  %v505 = vmul.f32 %v501, 0.5
  %v506 = vmul.f32 %v502, 0.5
  %v507 = vmul.f32 %v503, 0.5
  %v508 = vmul.f32 %v458, %v504
  %v509 = vmul.f32 %v463, %v505
  %v510 = vmul.f32 %v468, %v506
  %v511 = vmul.f32 %v473, %v507
  %512 = vmatprep.subr.mxu0 0.0
  %513 = vmatpush1.msra.mxu0 %v390
  %514 = vmatprep.subr.mxu0 0.0
  %515 = vmatpush1.msra.mxu0 %v389
  %516 = vmatprep.subr.mxu0 0.0
  %517 = vmatpush1.msra.mxu0 %v388
  %518 = vmatprep.subr.mxu0 0.0
  %519 = vmatpush1.msra.mxu0 %v387
  %520 = vmatprep.subr.mxu0 0.0
  %521 = vmatpush1.msra.mxu0 %v386
  %522 = vmatprep.subr.mxu0 0.0
  %523 = vmatpush1.msra.mxu0 %v385
  %524 = vmatprep.subr.mxu0 0.0
  %525 = vmatpush1.msra.mxu0 %v384
  %526 = vmatprep.subr.mxu0 0.0
  %527 = vmatpush1.msra.mxu0 %v383
  %528 = vmatprep.subr.mxu0 0.0
  %529 = vmatpush1.msra.mxu0 %v382
  %530 = vmatprep.subr.mxu0 0.0
  %531 = vmatpush1.msra.mxu0 %v381
  %532 = vmatprep.subr.mxu0 0.0
  %533 = vmatpush1.msra.mxu0 %v380
  %534 = vmatprep.subr.mxu0 0.0
  %535 = vmatpush1.msra.mxu0 %v379
  %536 = vmatprep.subr.mxu0 0.0
  %537 = vmatpush1.msra.mxu0 %v378
  %538 = vmatprep.subr.mxu0 0.0
  %539 = vmatpush1.msra.mxu0 %v377
  %540 = vmatprep.subr.mxu0 0.0
  %541 = vmatpush1.msra.mxu0 %v376
  %542 = vmatprep.subr.mxu0 0.0
  %543 = vmatpush1.msra.mxu0 %v375
  %544 = vmatprep.subr.mxu0 0.0
  %545 = vmatpush2.msra.mxu0 0.0
  %546 = vmatprep.subr.mxu0 0.0
  %547 = vmatpush2.msra.mxu0 0.0
  %548 = vmatprep.subr.mxu0 0.0
  %549 = vmatpush2.msra.mxu0 0.0
  %550 = vmatprep.subr.mxu0 0.0
  %551 = vmatpush2.msra.mxu0 0.0
  %552 = vmatprep.subr.mxu0 0.0
  %553 = vmatpush2.msra.mxu0 0.0
  %554 = vmatprep.subr.mxu0 0.0
  %555 = vmatpush2.msra.mxu0 0.0
  %556 = vmatprep.subr.mxu0 0.0
  %557 = vmatpush2.msra.mxu0 0.0
  %558 = vmatprep.subr.mxu0 0.0
  %559 = vmatpush2.msra.mxu0 0.0
  %560 = vmatprep.subr.mxu0 0.0
  %561 = vmatpush2.msra.mxu0 0.0
  %562 = vmatprep.subr.mxu0 0.0
  %563 = vmatpush2.msra.mxu0 0.0
  %564 = vmatprep.subr.mxu0 0.0
  %565 = vmatpush2.msra.mxu0 0.0
  %566 = vmatprep.subr.mxu0 0.0
  %567 = vmatpush2.msra.mxu0 0.0
  %568 = vmatprep.subr.mxu0 0.0
  %569 = vmatpush2.msra.mxu0 0.0
  %570 = vmatprep.subr.mxu0 0.0
  %571 = vmatpush2.msra.mxu0 0.0
  %572 = vmatprep.subr.mxu0 0.0
  %573 = vmatpush2.msra.mxu0 0.0
  %574 = vmatprep.subr.mxu0 0.0
  %575 = vmatpush2.msra.mxu0 0.0
  %576 = vmatprep.mubr.f32.mxu0 0.0
  %577 = vmatmul.mubr.f32.gmra.mxu0 %v508
  %v578 = vpop.f32.mrf.mxu0
  %v579 = vadd.f32 0.0, %v578
  %v580 = vpop.f32.mrf.mxu0
  %581 = vmatprep.mubr.f32.mxu0 0.0
  %582 = vmatmul.mubr.f32.gmra.mxu0 %v509
  %v583 = vpop.f32.mrf.mxu0
  %v584 = vadd.f32 0.0, %v583
  %v585 = vpop.f32.mrf.mxu0
  %586 = vmatprep.mubr.f32.mxu0 0.0
  %587 = vmatmul.mubr.f32.gmra.mxu0 %v510
  %v588 = vpop.f32.mrf.mxu0
  %v589 = vadd.f32 0.0, %v588
  %v590 = vpop.f32.mrf.mxu0
  %591 = vmatprep.mubr.f32.mxu0 0.0
  %592 = vmatmul.mubr.f32.gmra.mxu0 %v511
  %v593 = vpop.f32.mrf.mxu0
  %v594 = vadd.f32 0.0, %v593
  %v595 = vpop.f32.mrf.mxu0
  %596 = vdwg.mxu0
  %v597 = vadd.f32 %v355, %v579
  %v598 = vadd.f32 %v356, %v584
  %v599 = vadd.f32 %v357, %v589
  %v600 = vadd.f32 %v358, %v594
  %v601 = vld [vmem:[%s1 + $0x1c0] sm:$0xff]
  %v602 = vld [vmem:[%s1 + $0x1c8] sm:$0xff]
  %v603 = vld [vmem:[%s1 + $0x1d0] sm:$0xff]
  %v604 = vld [vmem:[%s1 + $0x1d8] sm:$0xff]
  %v605 = vld [vmem:[%s1 + $0x1e0] sm:$0xff]
  %v606 = vld [vmem:[%s1 + $0x1e8] sm:$0xff]
  %v607 = vld [vmem:[%s1 + $0x1f0] sm:$0xff]
  %v608 = vld [vmem:[%s1 + $0x1f8] sm:$0xff]
  %v609 = vld [vmem:[%s1 + $0x200] sm:$0xff]
  %v610 = vld [vmem:[%s1 + $0x208] sm:$0xff]
  %v611 = vld [vmem:[%s1 + $0x210] sm:$0xff]
  %v612 = vld [vmem:[%s1 + $0x218] sm:$0xff]
  %v613 = vld [vmem:[%s1 + $0x220] sm:$0xff]
  %v614 = vld [vmem:[%s1 + $0x228] sm:$0xff]
  %v615 = vld [vmem:[%s1 + $0x230] sm:$0xff]
  %v616 = vld [vmem:[%s1 + $0x238] sm:$0xff]
  %v617 = vld [vmem:[%s1 + $0x240] sm:$0x1]
  %v618 = vlaneseq
  %v619 = vshrl.u32 %v618, 7
  %v620 = vsub.s32 0, %v619
  %v621 = vrot.slane %v617, %v620
  %622 = vmatprep.subr.mxu0 0.0
  %623 = vmatpush1.msra.mxu0 %v616
  %624 = vmatprep.subr.mxu0 0.0
  %625 = vmatpush1.msra.mxu0 %v615
  %626 = vmatprep.subr.mxu0 0.0
  %627 = vmatpush1.msra.mxu0 %v614
  %628 = vmatprep.subr.mxu0 0.0
  %629 = vmatpush1.msra.mxu0 %v613
  %630 = vmatprep.subr.mxu0 0.0
  %631 = vmatpush1.msra.mxu0 %v612
  %632 = vmatprep.subr.mxu0 0.0
  %633 = vmatpush1.msra.mxu0 %v611
  %634 = vmatprep.subr.mxu0 0.0
  %635 = vmatpush1.msra.mxu0 %v610
  %636 = vmatprep.subr.mxu0 0.0
  %637 = vmatpush1.msra.mxu0 %v609
  %638 = vmatprep.subr.mxu0 0.0
  %639 = vmatpush1.msra.mxu0 %v608
  %640 = vmatprep.subr.mxu0 0.0
  %641 = vmatpush1.msra.mxu0 %v607
  %642 = vmatprep.subr.mxu0 0.0
  %643 = vmatpush1.msra.mxu0 %v606
  %644 = vmatprep.subr.mxu0 0.0
  %645 = vmatpush1.msra.mxu0 %v605
  %646 = vmatprep.subr.mxu0 0.0
  %647 = vmatpush1.msra.mxu0 %v604
  %648 = vmatprep.subr.mxu0 0.0
  %649 = vmatpush1.msra.mxu0 %v603
  %650 = vmatprep.subr.mxu0 0.0
  %651 = vmatpush1.msra.mxu0 %v602
  %652 = vmatprep.subr.mxu0 0.0
  %653 = vmatpush1.msra.mxu0 %v601
  %654 = vmatprep.subr.mxu0 0.0
  %655 = vmatpush2.msra.mxu0 0.0
  %656 = vmatprep.subr.mxu0 0.0
  %657 = vmatpush2.msra.mxu0 0.0
  %658 = vmatprep.subr.mxu0 0.0
  %659 = vmatpush2.msra.mxu0 0.0
  %660 = vmatprep.subr.mxu0 0.0
  %661 = vmatpush2.msra.mxu0 0.0
  %662 = vmatprep.subr.mxu0 0.0
  %663 = vmatpush2.msra.mxu0 0.0
  %664 = vmatprep.subr.mxu0 0.0
  %665 = vmatpush2.msra.mxu0 0.0
  %666 = vmatprep.subr.mxu0 0.0
  %667 = vmatpush2.msra.mxu0 0.0
  %668 = vmatprep.subr.mxu0 0.0
  %669 = vmatpush2.msra.mxu0 0.0
  %670 = vmatprep.subr.mxu0 0.0
  %671 = vmatpush2.msra.mxu0 0.0
  %672 = vmatprep.subr.mxu0 0.0
  %673 = vmatpush2.msra.mxu0 0.0
  %674 = vmatprep.subr.mxu0 0.0
  %675 = vmatpush2.msra.mxu0 0.0
  %676 = vmatprep.subr.mxu0 0.0
  %677 = vmatpush2.msra.mxu0 0.0
  %678 = vmatprep.subr.mxu0 0.0
  %679 = vmatpush2.msra.mxu0 0.0
  %680 = vmatprep.subr.mxu0 0.0
  %681 = vmatpush2.msra.mxu0 0.0
  %682 = vmatprep.subr.mxu0 0.0
  %683 = vmatpush2.msra.mxu0 0.0
  %684 = vmatprep.subr.mxu0 0.0
  %685 = vmatpush2.msra.mxu0 0.0
  %686 = vmatprep.mubr.f32.mxu0 0.0
  %687 = vmatmul.mubr.f32.gmra.mxu0 %v597
  %v688 = vpop.f32.mrf.mxu0
  %v689 = vadd.f32 %v621, %v688
  %v690 = vpop.f32.mrf.mxu0
  %691 = vmatprep.mubr.f32.mxu0 0.0
  %692 = vmatmul.mubr.f32.gmra.mxu0 %v598
  %v693 = vpop.f32.mrf.mxu0
  %v694 = vadd.f32 %v621, %v693
  %v695 = vpop.f32.mrf.mxu0
  %696 = vmatprep.mubr.f32.mxu0 0.0
  %697 = vmatmul.mubr.f32.gmra.mxu0 %v599
  %v698 = vpop.f32.mrf.mxu0
  %v699 = vadd.f32 %v621, %v698
  %v700 = vpop.f32.mrf.mxu0
  %701 = vmatprep.mubr.f32.mxu0 0.0
  %702 = vmatmul.mubr.f32.gmra.mxu0 %v600
  %v703 = vpop.f32.mrf.mxu0
  %v704 = vadd.f32 %v621, %v703
  %v705 = vpop.f32.mrf.mxu0
  %706 = vdwg.mxu0
  %707 = vst [vmem:[%s2] sm:$0xff] %v689
  %708 = vst [vmem:[%s2 + $0x8] sm:$0xff] %v694
  %709 = vst [vmem:[%s2 + $0x10] sm:$0xff] %v699
  %710 = vst [vmem:[%s2 + $0x18] sm:$0xff] %v704
  // Predicated region
  $region10: #{patchmixer_embedder_forward.1} parent=0 // pred_check
    _
  $region11: #{patchmixer_embedder_forward.1} parent=0 // pred_check_branch
    %712 = sbr.rel (0) target = $region13
  $region12: #{patchmixer_embedder_forward.1} parent=0 // pred_region
    _
  $region13: #{patchmixer_embedder_forward.1} parent=0 // pred_fallthru
    _
  // Predicated region
  $region14: #{patchmixer_embedder_forward.1} parent=0 // pred_check
    _
  $region15: #{patchmixer_embedder_forward.1} parent=0 // pred_check_branch
    %714 = sbr.rel (0) target = $region17
  $region16: #{patchmixer_embedder_forward.1} parent=0 // pred_region
    _
  $region17: #{patchmixer_embedder_forward.1} parent=0 // pred_fallthru
    _

</llo_original>
